<compile_context>
chip_gen: v7x
topology: tpu7x:2x2x1
jax: 0.10.0
libtpu: 0.0.40
codegen_flags: <defaults>
</compile_context>

<pallas_src>
import math

import jax
import jax.numpy as jnp
from jax.experimental import pallas as pl
from jax.experimental.pallas import tpu as pltpu

SQRT2 = math.sqrt(2.0)
INV_SQRT2 = 1.0 / math.sqrt(2.0)
_VMEM_LIMIT_BYTES = 32 * 1024 * 1024


# ---------------------------------------------------------------------------
# Pallas kernels
# ---------------------------------------------------------------------------
def _im2col_3x3(xp, TH, W):
    """(TH+2, W+2, C) f32 -> (TH*W, 9*C) f32 patch matrix, built once per block."""
    C = xp.shape[-1]
    cols = [xp[kh:kh + TH, kw:kw + W, :] for kh in range(3) for kw in range(3)]
    return jnp.concatenate(cols, axis=-1).reshape(TH * W, 9 * C)


def _make_conv1_kernel(TH, W, Cout):
    """StyledConv #1: modulated 3x3 conv + FusedLeakyReLU (bias, slope 0.2, sqrt(2) gain)."""

    def kernel(xp_ref, w_ref, b_ref, o_ref):
        xp = xp_ref[0].astype(jnp.float32)                       # (TH+2, W+2, Cin)
        patches = _im2col_3x3(xp, TH, W)                         # (TH*W, 9*Cin) f32
        y = jnp.dot(patches.astype(jnp.bfloat16), w_ref[0],
                    preferred_element_type=jnp.float32)          # (TH*W, Cout) f32
        y = y + b_ref[...]
        y = jnp.where(y >= 0.0, y, 0.2 * y) * SQRT2
        o_ref[...] = y.reshape(1, TH, W, Cout).astype(o_ref.dtype)

    return kernel


def _make_conv2_skip_kernel(TH, W, Cin, Cout_p):
    """StyledConv #2 fused with the 1x1 skip conv and the (skip+res)/sqrt(2) merge.

    conv2's sqrt(2) activation gain cancels the final /sqrt(2), so only the skip
    branch is scaled (single VPU multiply).
    """

    def kernel(hp_ref, w_ref, b_ref, xc_ref, wsk_ref, o_ref):
        hp = hp_ref[0].astype(jnp.float32)                       # (TH+2, W+2, Cmid)
        patches = _im2col_3x3(hp, TH, W)                         # (TH*W, 9*Cmid) f32
        y = jnp.dot(patches.astype(jnp.bfloat16), w_ref[0],
                    preferred_element_type=jnp.float32)          # (TH*W, Cout_p) f32
        y = y + b_ref[...]
        res = jnp.where(y >= 0.0, y, 0.2 * y)                    # gain folded with /sqrt(2)

        xc = xc_ref[0].astype(jnp.float32).reshape(TH * W, Cin)  # center rows of x
        skip = jnp.dot(xc, wsk_ref[...],                         # 1x1 skip (or identity)
                       preferred_element_type=jnp.float32)       # (TH*W, Cout_p) f32

        out = skip * INV_SQRT2 + res
        o_ref[...] = out.reshape(1, TH * W, Cout_p).astype(o_ref.dtype)

    return kernel


# ---------------------------------------------------------------------------
# pallas_call wrappers (tiling, halo construction, lane-dense output)
# ---------------------------------------------------------------------------
def _pick_row_tile(H, W, C):
    """Row-tile height: multiple of 8 dividing H, >= 2 tiles per image when possible,
    sized so double-buffered blocks stay well inside VMEM on every TPU generation."""
    if H % 8 != 0:
        return H

    def blk_bytes(th):
        halo_in = (th + 2) * (W + 2) * C * 2          # bf16 haloed input block
        patches = th * W * 9 * C * 4                  # f32 im2col working set
        out_blk = th * W * max(C, 128) * 4            # f32 lane-padded output block
        return 2 * (halo_in + out_blk) + patches

    cands = [th for th in range(8, H + 1, 8) if H % th == 0]
    fit = [th for th in cands if blk_bytes(th) <= (8 << 20)] or [min(cands)]
    multi = [th for th in fit if H // th >= 2]
    return max(multi) if multi else max(fit)


def _halo_row_tiles(x_nhwc, TH, dtype):
    """(B,H,W,C) -> (B*T, TH+2, W+2, C): overlapping row tiles of the zero-padded input."""
    B, H, W, C = x_nhwc.shape
    T = H // TH
    xp = jnp.pad(x_nhwc, ((0, 0), (1, 1), (1, 1), (0, 0)))
    tiles = jnp.stack([xp[:, t * TH:t * TH + TH + 2] for t in range(T)], axis=1)
    return tiles.reshape(B * T, TH + 2, W + 2, C).astype(dtype)


def _styled_conv1(x_nhwc, w_mat, act_bias, TH):
    """First StyledConv. Returns h as bf16 NHWC (halves the HBM round trip to conv2)."""
    B, H, W, Cin = x_nhwc.shape
    Cout = w_mat.shape[-1]
    T = H // TH
    x_tiles = _halo_row_tiles(x_nhwc, TH, jnp.bfloat16)          # (B*T, TH+2, W+2, Cin)

    out = pl.pallas_call(
        _make_conv1_kernel(TH, W, Cout),
        out_shape=jax.ShapeDtypeStruct((B * T, TH, W, Cout), jnp.bfloat16),
        grid=(B, T),
        in_specs=[
            pl.BlockSpec((1, TH + 2, W + 2, Cin), lambda b, t: (b * T + t, 0, 0, 0)),
            pl.BlockSpec((1, 9 * Cin, Cout), lambda b, t: (b, 0, 0)),
            pl.BlockSpec((1, Cout), lambda b, t: (0, 0)),
        ],
        out_specs=pl.BlockSpec((1, TH, W, Cout), lambda b, t: (b * T + t, 0, 0, 0)),
        compiler_params=pltpu.CompilerParams(
            dimension_semantics=("parallel", "parallel"),
            vmem_limit_bytes=_VMEM_LIMIT_BYTES),
    )(x_tiles, w_mat.astype(jnp.bfloat16), act_bias.reshape(1, Cout))
    return out.reshape(B, H, W, Cout)


def _styled_conv2_skip(h_nhwc, w_mat, act_bias, x_nhwc, w_skip, TH):
    """Second StyledConv fused with the 1x1 skip conv (identity expressed as an identity
    1x1 weight) and the (skip + res)/sqrt(2) residual merge. Lane-dense f32 output."""
    B, H, W, Cmid = h_nhwc.shape
    Cin = x_nhwc.shape[-1]
    Cout = w_mat.shape[-1]
    Cout_p = ((Cout + 127) // 128) * 128              # lane-dense store via padded weights
    T = H // TH

    h_tiles = _halo_row_tiles(h_nhwc, TH, jnp.bfloat16)          # (B*T, TH+2, W+2, Cmid)
    x_tiles = x_nhwc.reshape(B * T, TH, W, Cin)                  # center rows, no halo

    w_pad = jnp.pad(w_mat, ((0, 0), (0, 0), (0, Cout_p - Cout))).astype(jnp.bfloat16)
    b_pad = jnp.pad(act_bias, (0, Cout_p - Cout)).reshape(1, Cout_p)
    if w_skip is None:                                            # identity skip (Cin==Cout)
        wsk = jnp.eye(Cin, Cout_p, dtype=jnp.float32)
    else:
        wsk = jnp.pad(w_skip, ((0, 0), (0, Cout_p - Cout)))       # (Cin, Cout_p) f32

    out = pl.pallas_call(
        _make_conv2_skip_kernel(TH, W, Cin, Cout_p),
        out_shape=jax.ShapeDtypeStruct((B * T, TH * W, Cout_p), jnp.float32),
        grid=(B, T),
        in_specs=[
            pl.BlockSpec((1, TH + 2, W + 2, Cmid), lambda b, t: (b * T + t, 0, 0, 0)),
            pl.BlockSpec((1, 9 * Cmid, Cout_p), lambda b, t: (b, 0, 0)),
            pl.BlockSpec((1, Cout_p), lambda b, t: (0, 0)),
            pl.BlockSpec((1, TH, W, Cin), lambda b, t: (b * T + t, 0, 0, 0)),
            pl.BlockSpec((Cin, Cout_p), lambda b, t: (0, 0)),
        ],
        out_specs=pl.BlockSpec((1, TH * W, Cout_p), lambda b, t: (b * T + t, 0, 0)),
        compiler_params=pltpu.CompilerParams(
            dimension_semantics=("parallel", "parallel"),
            vmem_limit_bytes=_VMEM_LIMIT_BYTES),
    )(h_tiles, w_pad, b_pad, x_tiles, wsk)

    return out.reshape(B, H, W, Cout_p)[..., :Cout]


# ---------------------------------------------------------------------------
# Parameters + weight modulation (glue, plain JAX)
# ---------------------------------------------------------------------------
def make_params(key, inch, outch, styledim):
    ks = jax.random.split(key, 5)
    params = {
        "c1": dict(
            mod_w=jax.random.normal(ks[0], (inch, styledim), jnp.float32),   # EqualLinear
            mod_b=jnp.ones((inch,), jnp.float32),                            # bias_init=1
            weight=jax.random.normal(ks[1], (outch, inch, 3, 3), jnp.float32),
            act_bias=jnp.zeros((outch,), jnp.float32),                       # FusedLeakyReLU
        ),
        "c2": dict(
            mod_w=jax.random.normal(ks[2], (outch, styledim), jnp.float32),
            mod_b=jnp.ones((outch,), jnp.float32),
            weight=jax.random.normal(ks[3], (outch, outch, 3, 3), jnp.float32),
            act_bias=jnp.zeros((outch,), jnp.float32),
        ),
    }
    if inch != outch:
        params["skip_w"] = jax.random.normal(ks[4], (outch, inch, 1, 1), jnp.float32)
    return params


def _modulated_weight(style, mod_w, mod_b, weight, styledim):
    """ModulatedConv2d per-batch demodulated weights -> (B, 9*Cin, Cout) matmul layout."""
    s = style @ (mod_w * (1.0 / math.sqrt(styledim))).T + mod_b              # (B, Cin)
    Cout, Cin, K, _ = weight.shape
    scale = 1.0 / math.sqrt(Cin * K * K)
    w = scale * weight[None] * s[:, None, :, None, None]                     # (B,Cout,Cin,K,K)
    demod = jax.lax.rsqrt(jnp.sum(w * w, axis=(2, 3, 4)) + 1e-8)             # (B, Cout)
    w = w * demod[:, :, None, None, None]
    # column order (kh*3 + kw)*Cin + c  ==  in-kernel im2col concat order
    return jnp.transpose(w, (0, 3, 4, 2, 1)).reshape(w.shape[0], K * K * Cin, Cout)


def resolution_preserving_resnet_block(params, x_nchw, style, inch, outch, styledim):
    B, _, H, W = x_nchw.shape
    x = jnp.transpose(x_nchw, (0, 2, 3, 1)).astype(jnp.float32)              # NCHW -> NHWC
    TH = _pick_row_tile(H, W, max(inch, outch))

    w1 = _modulated_weight(style, params["c1"]["mod_w"], params["c1"]["mod_b"],
                           params["c1"]["weight"], styledim)                 # (B, 9*inch, outch)
    h = _styled_conv1(x, w1, params["c1"]["act_bias"], TH)                   # (B,H,W,outch) bf16

    w2 = _modulated_weight(style, params["c2"]["mod_w"], params["c2"]["mod_b"],
                           params["c2"]["weight"], styledim)                 # (B, 9*outch, outch)
    if inch != outch:
        w_skip = (params["skip_w"][:, :, 0, 0] * (1.0 / math.sqrt(inch))).T  # (inch, outch)
    else:
        w_skip = None
    out = _styled_conv2_skip(h, w2, params["c2"]["act_bias"], x, w_skip, TH)

    # TODO(synk): NoiseInjection omitted (weight initialized to 0 -> exact no-op at init).
    return jnp.transpose(out, (0, 3, 1, 2))                                  # NHWC -> NCHW


# ---------------------------------------------------------------------------
# Pure-JAX reference (for validation)
# ---------------------------------------------------------------------------
def _ref_forward(params, x_nchw, style, inch, outch, styledim):
    B = x_nchw.shape[0]

    def styled_conv(x, mod_w, mod_b, weight, act_bias):
        s = style @ (mod_w * (1.0 / math.sqrt(styledim))).T + mod_b
        Cout, Cin, K, _ = weight.shape
        scale = 1.0 / math.sqrt(Cin * K * K)
        w = scale * weight[None] * s[:, None, :, None, None]
        demod = jax.lax.rsqrt(jnp.sum(w * w, axis=(2, 3, 4)) + 1e-8)
        w = w * demod[:, :, None, None, None]
        outs = []
        for b in range(B):
            outs.append(jax.lax.conv_general_dilated(
                x[b:b + 1], w[b], (1, 1), "SAME",
                dimension_numbers=("NCHW", "OIHW", "NCHW")))
        o = jnp.concatenate(outs, axis=0) + act_bias[None, :, None, None]
        return jnp.where(o >= 0, o, 0.2 * o) * SQRT2

    if inch != outch:
        wsk = params["skip_w"] * (1.0 / math.sqrt(inch))
        skip = jax.lax.conv_general_dilated(
            x_nchw, wsk, (1, 1), "VALID",
            dimension_numbers=("NCHW", "OIHW", "NCHW"))
    else:
        skip = x_nchw

    h = styled_conv(x_nchw, params["c1"]["mod_w"], params["c1"]["mod_b"],
                    params["c1"]["weight"], params["c1"]["act_bias"])
    res = styled_conv(h, params["c2"]["mod_w"], params["c2"]["mod_b"],
                      params["c2"]["weight"], params["c2"]["act_bias"])
    return (skip + res) / SQRT2


# ---------------------------------------------------------------------------
if __name__ == "__main__":
    key = jax.random.PRNGKey(0)
    B, H, W, styledim = 2, 16, 16, 8

    def run_case(case_key, inch, outch, tol):
        kx, ks, kp = jax.random.split(case_key, 3)
        x = jax.random.normal(kx, (B, inch, H, W), jnp.float32)
        style = jax.random.normal(ks, (B, styledim), jnp.float32)
        params = make_params(kp, inch, outch, styledim)
        out = jax.block_until_ready(
            resolution_preserving_resnet_block(params, x, style, inch, outch, styledim))
        assert out.shape == (B, outch, H, W), out.shape
        ref = _ref_forward(params, x, style, inch, outch, styledim)
        err = float(jnp.max(jnp.abs(out - ref)))
        # bf16 MXU operands -> looser tolerance than the pure-f32 reference
        assert err < tol, f"inch={inch} outch={outch}: max abs err vs reference {err}"

    k1, k2 = jax.random.split(key)
    run_case(k1, 4, 8, 1e-1)   # channel-changing path (fused 1x1 EqualConv2d skip)
    run_case(k2, 8, 8, 1e-1)   # identity-skip path
    print("KERNEL_OK")
</pallas_src>

<mosaic_0001>
module attributes {stable_mosaic.version = 11 : i64} {
  func.func @kernel(%arg0: i32, %arg1: i32, %arg2: memref<1x10x18x4xbf16, #tpu.memory_space<vmem>>, %arg3: memref<1x36x8xbf16, #tpu.memory_space<vmem>>, %arg4: memref<1x8xf32, #tpu.memory_space<vmem>>, %arg5: memref<1x8x16x8xbf16, #tpu.memory_space<vmem>>) attributes {dimension_semantics = [#tpu.dimension_semantics<parallel>, #tpu.dimension_semantics<parallel>], iteration_bounds = array<i64: 2, 2>, scalar_prefetch = 0 : i64, scratch_operands = 0 : i64, tpu.core_type = #tpu.core_type<tc>, window_params = [{transform_indices = @transform_0, window_bounds = array<i64: 1, 10, 18, 4>}, {transform_indices = @transform_1, window_bounds = array<i64: 1, 36, 8>}, {pipeline_mode = #tpu.pipeline_mode<synchronous>, transform_indices = @transform_2, window_bounds = array<i64: 1, 8>}, {transform_indices = @transform_3, window_bounds = array<i64: 1, 8, 16, 8>}]} {
    %c0 = arith.constant 0 : index
    %c0_0 = arith.constant 0 : index
    %c0_1 = arith.constant 0 : index
    %c0_2 = arith.constant 0 : index
    %0 = vector.load %arg2[%c0, %c0_0, %c0_1, %c0_2] : memref<1x10x18x4xbf16, #tpu.memory_space<vmem>>, vector<1x10x18x4xbf16>
    %1 = vector.shape_cast %0 : vector<1x10x18x4xbf16> to vector<10x18x4xbf16>
    %2 = arith.extf %1 : vector<10x18x4xbf16> to vector<10x18x4xf32>
    %3 = vector.extract_strided_slice %2 {offsets = [0, 0, 0], sizes = [8, 16, 4], strides = [1, 1, 1]} : vector<10x18x4xf32> to vector<8x16x4xf32>
    %4 = vector.extract_strided_slice %2 {offsets = [0, 1, 0], sizes = [8, 16, 4], strides = [1, 1, 1]} : vector<10x18x4xf32> to vector<8x16x4xf32>
    %5 = vector.extract_strided_slice %2 {offsets = [0, 2, 0], sizes = [8, 16, 4], strides = [1, 1, 1]} : vector<10x18x4xf32> to vector<8x16x4xf32>
    %6 = vector.extract_strided_slice %2 {offsets = [1, 0, 0], sizes = [8, 16, 4], strides = [1, 1, 1]} : vector<10x18x4xf32> to vector<8x16x4xf32>
    %7 = vector.extract_strided_slice %2 {offsets = [1, 1, 0], sizes = [8, 16, 4], strides = [1, 1, 1]} : vector<10x18x4xf32> to vector<8x16x4xf32>
    %8 = vector.extract_strided_slice %2 {offsets = [1, 2, 0], sizes = [8, 16, 4], strides = [1, 1, 1]} : vector<10x18x4xf32> to vector<8x16x4xf32>
    %9 = vector.extract_strided_slice %2 {offsets = [2, 0, 0], sizes = [8, 16, 4], strides = [1, 1, 1]} : vector<10x18x4xf32> to vector<8x16x4xf32>
    %10 = vector.extract_strided_slice %2 {offsets = [2, 1, 0], sizes = [8, 16, 4], strides = [1, 1, 1]} : vector<10x18x4xf32> to vector<8x16x4xf32>
    %11 = vector.extract_strided_slice %2 {offsets = [2, 2, 0], sizes = [8, 16, 4], strides = [1, 1, 1]} : vector<10x18x4xf32> to vector<8x16x4xf32>
    %12 = tpu.concatenate %3, %4, %5, %6, %7, %8, %9, %10, %11 in 2 : vector<8x16x4xf32>, vector<8x16x4xf32>, vector<8x16x4xf32>, vector<8x16x4xf32>, vector<8x16x4xf32>, vector<8x16x4xf32>, vector<8x16x4xf32>, vector<8x16x4xf32>, vector<8x16x4xf32> -> vector<8x16x36xf32>
    %13 = vector.shape_cast %12 : vector<8x16x36xf32> to vector<128x36xf32>
    %14 = arith.truncf %13 : vector<128x36xf32> to vector<128x36xbf16>
    %c0_3 = arith.constant 0 : index
    %c0_4 = arith.constant 0 : index
    %c0_5 = arith.constant 0 : index
    %15 = vector.load %arg3[%c0_3, %c0_4, %c0_5] : memref<1x36x8xbf16, #tpu.memory_space<vmem>>, vector<1x36x8xbf16>
    %16 = vector.shape_cast %15 : vector<1x36x8xbf16> to vector<36x8xbf16>
    %cst = arith.constant dense<0.000000e+00> : vector<128x8xf32>
    %17 = tpu.matmul %14, %16, %cst {dimension_numbers = #tpu.dot_dimension_numbers<[1], [0], [0], [1], [0, 0, 1, 1], [], []>} : vector<128x36xbf16>, vector<36x8xbf16>, vector<128x8xf32> -> vector<128x8xf32>
    %c0_6 = arith.constant 0 : index
    %c0_7 = arith.constant 0 : index
    %18 = vector.load %arg4[%c0_6, %c0_7] : memref<1x8xf32, #tpu.memory_space<vmem>>, vector<1x8xf32>
    %19 = vector.broadcast %18 : vector<1x8xf32> to vector<128x8xf32>
    %20 = arith.addf %17, %19 : vector<128x8xf32>
    %cst_8 = arith.constant 0.000000e+00 : f32
    %21 = vector.broadcast %cst_8 : f32 to vector<128x8xf32>
    %22 = arith.cmpf oge, %20, %21 : vector<128x8xf32>
    %cst_9 = arith.constant 2.000000e-01 : f32
    %23 = vector.broadcast %cst_9 : f32 to vector<128x8xf32>
    %24 = arith.mulf %23, %20 : vector<128x8xf32>
    %25 = arith.select %22, %20, %24 : vector<128x8xi1>, vector<128x8xf32>
    %cst_10 = arith.constant 1.41421354 : f32
    %26 = vector.broadcast %cst_10 : f32 to vector<128x8xf32>
    %27 = arith.mulf %25, %26 : vector<128x8xf32>
    %28 = vector.shape_cast %27 : vector<128x8xf32> to vector<1x8x16x8xf32>
    %29 = arith.truncf %28 : vector<1x8x16x8xf32> to vector<1x8x16x8xbf16>
    %c0_11 = arith.constant 0 : index
    %c0_12 = arith.constant 0 : index
    %c0_13 = arith.constant 0 : index
    %c0_14 = arith.constant 0 : index
    %30 = vector.load %arg5[%c0_11, %c0_12, %c0_13, %c0_14] : memref<1x8x16x8xbf16, #tpu.memory_space<vmem>>, vector<1x8x16x8xbf16>
    tpu.vector_store %arg5[%c0_11, %c0_12, %c0_13, %c0_14], %29 {strides = array<i32>} : memref<1x8x16x8xbf16, #tpu.memory_space<vmem>>, vector<1x8x16x8xbf16>,
    return
  }
  func.func @transform_0(%arg0: i32, %arg1: i32) -> (i32, i32, i32, i32) {
    %c2_i32 = arith.constant 2 : i32
    %0 = arith.muli %arg0, %c2_i32 : i32
    %1 = arith.addi %0, %arg1 : i32
    %c0_i32 = arith.constant 0 : i32
    %c0_i32_0 = arith.constant 0 : i32
    %c0_i32_1 = arith.constant 0 : i32
    %c0_i32_2 = arith.constant 0 : i32
    return %1, %c0_i32, %c0_i32_0, %c0_i32_1 : i32, i32, i32, i32
  }
  func.func @transform_1(%arg0: i32, %arg1: i32) -> (i32, i32, i32) {
    %c0_i32 = arith.constant 0 : i32
    %c0_i32_0 = arith.constant 0 : i32
    %c0_i32_1 = arith.constant 0 : i32
    return %arg0, %c0_i32, %c0_i32_0 : i32, i32, i32
  }
  func.func @transform_2(%arg0: i32, %arg1: i32) -> (i32, i32) {
    %c0_i32 = arith.constant 0 : i32
    %c0_i32_0 = arith.constant 0 : i32
    %c0_i32_1 = arith.constant 0 : i32
    return %c0_i32, %c0_i32_0 : i32, i32
  }
  func.func @transform_3(%arg0: i32, %arg1: i32) -> (i32, i32, i32, i32) {
    %c2_i32 = arith.constant 2 : i32
    %0 = arith.muli %arg0, %c2_i32 : i32
    %1 = arith.addi %0, %arg1 : i32
    %c0_i32 = arith.constant 0 : i32
    %c0_i32_0 = arith.constant 0 : i32
    %c0_i32_1 = arith.constant 0 : i32
    %c0_i32_2 = arith.constant 0 : i32
    return %1, %c0_i32, %c0_i32_0, %c0_i32_1 : i32, i32, i32, i32
  }
}

</mosaic_0001>

<llo_original>
// kernel: tpu_custom_call.1
$region0: #{tpu_custom_call.1}
  #allocation0 [shape = 'u32[]', space=smem, size = 0x4, offset = 0x4, fixed_abs, tag = 'smem constant byte address 0x4 - core index']
  #allocation1 [shape = 'u32[144,128]{1,0:T(1,128)}', space=vmem, size = 0x12000, scoped, tag = 'internal scratch']
  %s0 = inlined_call_operand.vmem [shape: bf16[4,10,18,4], index: 0, kind: input, shape index: {}]
  %s1 = inlined_call_operand.vmem [shape: bf16[2,36,8], index: 1, kind: input, shape index: {}]
  %s2 = inlined_call_operand.vmem [shape: f32[1,8], index: 2, kind: input, shape index: {}]
  %s3 = inlined_call_operand.vmem [shape: bf16[4,8,16,8], index: 3, kind: output, shape index: {}]
  %s4 = sld [smem:[#allocation0]]
  $region45: #{tpu_custom_call.1} parent=0
    _
  %s6 = ssub.s32 1, %s4
  %s7 = scalar_select 0, %s6, %s4
  loop: start=0, step=1, limit=6
  $region2: #{tpu_custom_call.1} parent=0 // loop_pre_header
    _
  $region3: #{tpu_custom_call.1} parent=0 // loop_header
    %s9 = sphi 0, %s13
    %p10 = scmp.ge.s32.totalorder %s9, 6
    %s16 = sphi 0, %s28
    %s17 = sphi 0, %s24
    %s18 = sphi 0, %s16
    %s19 = sphi 0, %s17
    %s20 = sphi 0, %s18
    %s21 = sphi 0, %s19
    %s35 = sphi 0, %s37
    %s38 = sphi 0, %s35
    %s39 = sphi 0, %s38
    %s55 = sphi 0, %s39
    %s61 = sphi 0, %s63
    %s64 = sphi 0, %s61
    %s65 = sphi 0, %s64
    %s81 = sphi 0, %s65
    %s85 = sphi 0, %s85
    %s87 = sphi 0, %s85
    %s88 = sphi 0, %s87
    %s102 = sphi 0, %s88
    %s112 = sphi 0, %s114
    %s115 = sphi 0, %s112
    %s116 = sphi 0, %s115
    %s132 = sphi 0, %s116
  $region4: #{tpu_custom_call.1} parent=0 // loop_header_branch
    %12 = sbr.rel (%p10) target = $region8
  $region5: #{tpu_custom_call.1} parent=0 // loop_body
    %s14 = ssub.s32 %s9, 1
    %s15 = ssub.s32 %s9, 2
    %s22 = sadd.s32 1, %s17
    %p23 = scmp.ge.s32.totalorder %s22, 2
    %s24 = scalar_select %p23, 0, %s22
    %s25 = sadd.s32 1, %s16
    %s26 = scalar_select %p23, %s25, %s16
    %p27 = scmp.ge.s32.totalorder %s26, 2
    %s28 = scalar_select %p27, 0, %s26
    %s29 = smul.u32 %s16, 2
    %s30 = sadd.s32 %s29, %s17
    %s31 = smul.u32 %s28, 2
    %s32 = sadd.s32 %s31, %s24
    %s33 = ssub.s32 %s30, %s32
    %p34 = scmp.eq.s32.totalorder %s33, 0
    %s36 = sadd.s32 %s35, 1
    %s37 = scalar_select %p34, %s35, %s36
    %p40 = pneg %p34
    %p41 = scmp.eq.s32.totalorder %s9, 3
    %p42 = por %p40, %p41
    %p43 = scmp.ne.s32.totalorder %s35, %s38
    %p44 = scmp.eq.s32.totalorder %s9, 0
    %p45 = por %p43, %p44
    %p46 = scmp.ne.s32.totalorder %s35, %s38
    %p47 = scmp.eq.s32.totalorder %s14, 3
    %p48 = por %p46, %p47
    %p49 = scmp.ne.s32.totalorder %s38, %s39
    %p50 = scmp.eq.s32.totalorder %s14, 0
    %p51 = por %p49, %p50
    %p52 = scmp.ne.s32.totalorder %s38, %s39
    %p53 = scmp.eq.s32.totalorder %s15, 3
    %p54 = por %p52, %p53
    %p56 = scmp.ne.s32.totalorder %s39, %s55
    %p57 = scmp.eq.s32.totalorder %s15, 0
    %p58 = por %p56, %p57
    %s59 = ssub.s32 %s16, %s28
    %p60 = scmp.eq.s32.totalorder %s59, 0
    %s62 = sadd.s32 %s61, 1
    %s63 = scalar_select %p60, %s61, %s62
    %p66 = pneg %p60
    %p67 = scmp.eq.s32.totalorder %s9, 3
    %p68 = por %p66, %p67
    %p69 = scmp.ne.s32.totalorder %s61, %s64
    %p70 = scmp.eq.s32.totalorder %s9, 0
    %p71 = por %p69, %p70
    %p72 = scmp.ne.s32.totalorder %s61, %s64
    %p73 = scmp.eq.s32.totalorder %s14, 3
    %p74 = por %p72, %p73
    %p75 = scmp.ne.s32.totalorder %s64, %s65
    %p76 = scmp.eq.s32.totalorder %s14, 0
    %p77 = por %p75, %p76
    %p78 = scmp.ne.s32.totalorder %s64, %s65
    %p79 = scmp.eq.s32.totalorder %s15, 3
    %p80 = por %p78, %p79
    %p82 = scmp.ne.s32.totalorder %s65, %s81
    %p83 = scmp.eq.s32.totalorder %s15, 0
    %p84 = por %p82, %p83
    %s86 = sadd.s32 %s85, 1
    %p89 = scmp.eq.s32.totalorder %s9, 3
    %p90 = scmp.ne.s32.totalorder %s85, %s87
    %p91 = scmp.eq.s32.totalorder %s9, 0
    %p92 = por %p90, %p91
    %p93 = scmp.ne.s32.totalorder %s85, %s87
    %p94 = scmp.eq.s32.totalorder %s14, 3
    %p95 = por %p93, %p94
    %p96 = scmp.ne.s32.totalorder %s87, %s88
    %p97 = scmp.eq.s32.totalorder %s14, 0
    %p98 = por %p96, %p97
    %p99 = scmp.ne.s32.totalorder %s87, %s88
    %p100 = scmp.eq.s32.totalorder %s15, 3
    %p101 = por %p99, %p100
    %p103 = scmp.ne.s32.totalorder %s88, %s102
    %p104 = scmp.eq.s32.totalorder %s15, 0
    %p105 = por %p103, %p104
    %s106 = smul.u32 %s16, 2
    %s107 = sadd.s32 %s106, %s17
    %s108 = smul.u32 %s28, 2
    %s109 = sadd.s32 %s108, %s24
    %s110 = ssub.s32 %s107, %s109
    %p111 = scmp.eq.s32.totalorder %s110, 0
    %s113 = sadd.s32 %s112, 1
    %s114 = scalar_select %p111, %s112, %s113
    %p117 = pneg %p111
    %p118 = scmp.eq.s32.totalorder %s9, 3
    %p119 = por %p117, %p118
    %p120 = scmp.ne.s32.totalorder %s112, %s115
    %p121 = scmp.eq.s32.totalorder %s9, 0
    %p122 = por %p120, %p121
    %p123 = scmp.ne.s32.totalorder %s112, %s115
    %p124 = scmp.eq.s32.totalorder %s14, 3
    %p125 = por %p123, %p124
    %p126 = scmp.ne.s32.totalorder %s115, %s116
    %p127 = scmp.eq.s32.totalorder %s14, 0
    %p128 = por %p126, %p127
    %p129 = scmp.ne.s32.totalorder %s115, %s116
    %p130 = scmp.eq.s32.totalorder %s15, 3
    %p131 = por %p129, %p130
    %p133 = scmp.ne.s32.totalorder %s116, %s132
    %p134 = scmp.eq.s32.totalorder %s15, 0
    %p135 = por %p133, %p134
    %p136 = scmp.le.s32.totalorder 1, %s9
    %p137 = scmp.lt.s32.totalorder %s9, 5
    %p138 = pnand %p136, %p137
    %p139 = pneg %p138
    // Predicated region
    $region9: #{tpu_custom_call.1} parent=5 // pred_check
      _
    $region10: #{tpu_custom_call.1} parent=5 // pred_check_branch
      %141 = sbr.rel (%p138) target = $region12
    $region11: #{tpu_custom_call.1} parent=5 // pred_region
      %s142 = ssub.s32 %s9, 1
      // Predicated region
      $region13: #{tpu_custom_call.1} parent=11 // pred_check
        %p143 = pneg %p98
      $region14: #{tpu_custom_call.1} parent=11 // pred_check_branch
        %145 = sbr.rel (%p143) target = $region16
      $region15: #{tpu_custom_call.1} parent=11 // pred_region
        _
      $region16: #{tpu_custom_call.1} parent=11 // pred_fallthru
        _
    $region12: #{tpu_custom_call.1} parent=5 // pred_fallthru
      _
    %p146 = scmp.lt.s32.totalorder %s9, 4
    // Predicated region
    $region17: #{tpu_custom_call.1} parent=5 // pred_check
      %p147 = pneg %p146
    $region18: #{tpu_custom_call.1} parent=5 // pred_check_branch
      %149 = sbr.rel (%p147) target = $region20
    $region19: #{tpu_custom_call.1} parent=5 // pred_region
      // Predicated region
      $region21: #{tpu_custom_call.1} parent=19 // pred_check
        %p150 = pneg %p45
      $region22: #{tpu_custom_call.1} parent=19 // pred_check_branch
        %152 = sbr.rel (%p150) target = $region24
      $region23: #{tpu_custom_call.1} parent=19 // pred_region
        %s153 = smul.u32 %s16, 2
        %s154 = sadd.s32 %s153, %s17
        %p155 = scmp.lt.s32.totalorder %s154, 3
        %s156 = scalar_select %p155, %s154, 3
        %s157 = smul.addr %s156, 30
        %s158 = smul.addr %s157, 4
        %s159 = scalar_lea.vmem %s0, %s158
        %s160 = smul.u32 %s16, 2
        %s161 = sadd.s32 %s160, %s17
      $region24: #{tpu_custom_call.1} parent=19 // pred_fallthru
        _
      // Predicated region
      $region25: #{tpu_custom_call.1} parent=19 // pred_check
        %p162 = pneg %p71
      $region26: #{tpu_custom_call.1} parent=19 // pred_check_branch
        %164 = sbr.rel (%p162) target = $region28
      $region27: #{tpu_custom_call.1} parent=19 // pred_region
        %p165 = scmp.lt.s32.totalorder %s16, 1
        %s166 = scalar_select %p165, %s16, 1
        %s167 = smul.addr %s166, 5
        %s168 = smul.addr %s167, 4
        %s169 = scalar_lea.vmem %s1, %s168
      $region28: #{tpu_custom_call.1} parent=19 // pred_fallthru
        _
    $region20: #{tpu_custom_call.1} parent=5 // pred_fallthru
      _
    %p170 = scmp.le.s32.totalorder 1, %s9
    %p171 = scmp.lt.s32.totalorder %s9, 5
    %p172 = pnand %p170, %p171
    %p173 = pneg %p172
    // Predicated region
    $region29: #{tpu_custom_call.1} parent=5 // pred_check
      _
    $region30: #{tpu_custom_call.1} parent=5 // pred_check_branch
      %175 = sbr.rel (%p172) target = $region32
    $region31: #{tpu_custom_call.1} parent=5 // pred_region
      %s176 = ssub.s32 %s9, 1
      %s177 = smul.u32 %s18, 2
      %s178 = sadd.s32 %s177, %s19
      %p179 = scmp.lt.s32.totalorder %s178, 3
      %s180 = scalar_select %p179, %s178, 3
      %s181 = smul.addr %s180, 30
      %s182 = smul.addr %s181, 4
      %s183 = scalar_lea.vmem %s0, %s182
      %p184 = pneg %p51
      %p185 = pneg %p48
      %p186 = scmp.lt.s32.totalorder %s18, 1
      %s187 = scalar_select %p186, %s18, 1
      %s188 = smul.addr %s187, 5
      %s189 = smul.addr %s188, 4
      %s190 = scalar_lea.vmem %s1, %s189
      %p191 = pneg %p77
      %p192 = pneg %p74
      %p193 = pneg %p98
      %p194 = pneg %p95
      %p195 = pneg %p128
      %p196 = pneg %p125
      %s197 = smul.u32 %s18, 2
      %s198 = sadd.s32 %s197, %s19
      %p199 = scmp.lt.s32.totalorder %s198, 3
      %s200 = scalar_select %p199, %s198, 3
      %s201 = smul.addr %s200, 16
      %s202 = smul.addr %s201, 4
      %s203 = scalar_lea.vmem %s3, %s202
      %s204 = smul.u32 %s18, 2
      %s205 = sadd.s32 %s204, %s19
      %p206 = scmp.lt.s32.totalorder %s205, 3
      %s207 = scalar_select %p206, %s205, 3
      %s208 = smul.addr %s207, 30
      %s209 = smul.addr %s208, 4
      %s210 = scalar_lea.vmem %s0, %s209
      %s211 = smul.u32 %s18, 2
      %s212 = sadd.s32 %s211, %s19
      %p213 = scmp.lt.s32.totalorder %s18, 1
      %s214 = scalar_select %p213, %s18, 1
      %s215 = smul.addr %s214, 5
      %s216 = smul.addr %s215, 4
      %s217 = scalar_lea.vmem %s1, %s216
      %s218 = smul.u32 %s18, 2
      %s219 = sadd.s32 %s218, %s19
      %p220 = scmp.lt.s32.totalorder %s219, 3
      %s221 = scalar_select %p220, %s219, 3
      %s222 = smul.addr %s221, 16
      %s223 = smul.addr %s222, 4
      %s224 = scalar_lea.vmem %s3, %s223
      %s225 = smul.u32 %s18, 2
      %s226 = sadd.s32 %s225, %s19
      %v228 = vld [vmem:[%s210] sm:$0xf]
      %v229 = vld [vmem:[%s210 + $0x4] sm:$0xf]
      %v230 = vld [vmem:[%s210 + $0x8] sm:$0x1]
      %v231 = vld [vmem:[%s210 + $0xc] sm:$0xf]
      %v232 = vld [vmem:[%s210 + $0x10] sm:$0xf]
      %v233 = vld [vmem:[%s210 + $0x14] sm:$0x1]
      %v234 = vld [vmem:[%s210 + $0x18] sm:$0xf]
      %v235 = vld [vmem:[%s210 + $0x1c] sm:$0xf]
      %v236 = vld [vmem:[%s210 + $0x20] sm:$0x1]
      %v237 = vld [vmem:[%s210 + $0x24] sm:$0xf]
      %v238 = vld [vmem:[%s210 + $0x28] sm:$0xf]
      %v239 = vld [vmem:[%s210 + $0x2c] sm:$0x1]
      %v240 = vld [vmem:[%s210 + $0x30] sm:$0xf]
      %v241 = vld [vmem:[%s210 + $0x34] sm:$0xf]
      %v242 = vld [vmem:[%s210 + $0x38] sm:$0x1]
      %v243 = vld [vmem:[%s210 + $0x3c] sm:$0xf]
      %v244 = vld [vmem:[%s210 + $0x40] sm:$0xf]
      %v245 = vld [vmem:[%s210 + $0x44] sm:$0x1]
      %v246 = vld [vmem:[%s210 + $0x48] sm:$0xf]
      %v247 = vld [vmem:[%s210 + $0x4c] sm:$0xf]
      %v248 = vld [vmem:[%s210 + $0x50] sm:$0x1]
      %v249 = vld [vmem:[%s210 + $0x54] sm:$0xf]
      %v250 = vld [vmem:[%s210 + $0x58] sm:$0xf]
      %v251 = vld [vmem:[%s210 + $0x5c] sm:$0x1]
      %v252 = vld [vmem:[%s210 + $0x60] sm:$0xf]
      %v253 = vld [vmem:[%s210 + $0x64] sm:$0xf]
      %v254 = vld [vmem:[%s210 + $0x68] sm:$0x1]
      %v255 = vld [vmem:[%s210 + $0x6c] sm:$0xf]
      %v256 = vld [vmem:[%s210 + $0x70] sm:$0xf]
      %v257 = vld [vmem:[%s210 + $0x74] sm:$0x1]
      %v258 = vunpack.c.l.bf16 %v228
      %v259 = vunpack.c.l.bf16 %v229
      %v260 = vunpack.c.l.bf16 %v230
      %v261 = vunpack.c.l.bf16 %v231
      %v262 = vunpack.c.l.bf16 %v232
      %v263 = vunpack.c.l.bf16 %v233
      %v264 = vunpack.c.l.bf16 %v234
      %v265 = vunpack.c.l.bf16 %v235
      %v266 = vunpack.c.l.bf16 %v236
      %v267 = vunpack.c.l.bf16 %v237
      %v268 = vunpack.c.l.bf16 %v238
      %v269 = vunpack.c.l.bf16 %v239
      %v270 = vunpack.c.l.bf16 %v240
      %v271 = vunpack.c.l.bf16 %v241
      %v272 = vunpack.c.l.bf16 %v242
      %v273 = vunpack.c.l.bf16 %v243
      %v274 = vunpack.c.l.bf16 %v244
      %v275 = vunpack.c.l.bf16 %v245
      %v276 = vunpack.c.l.bf16 %v246
      %v277 = vunpack.c.l.bf16 %v247
      %v278 = vunpack.c.l.bf16 %v248
      %v279 = vunpack.c.l.bf16 %v249
      %v280 = vunpack.c.l.bf16 %v250
      %v281 = vunpack.c.l.bf16 %v251
      %v282 = vunpack.c.l.bf16 %v252
      %v283 = vunpack.c.l.bf16 %v253
      %v284 = vunpack.c.l.bf16 %v254
      %v285 = vunpack.c.l.bf16 %v255
      %v286 = vunpack.c.l.bf16 %v256
      %v287 = vunpack.c.l.bf16 %v257
      %vm312 = vcmask 1046528
      %v313 = vrot.slane %v258, 1
      %v314 = vrot.slane %v259, 1
      %v315 = vsel %vm312, %v313, %v314
      %v316 = vrot.slane %v260, 1
      %v317 = vsel %vm312, %v314, %v316
      %v318 = vrot.slane %v261, 1
      %v319 = vrot.slane %v262, 1
      %v320 = vsel %vm312, %v318, %v319
      %v321 = vrot.slane %v263, 1
      %v322 = vsel %vm312, %v319, %v321
      %v323 = vrot.slane %v264, 1
      %v324 = vrot.slane %v265, 1
      %v325 = vsel %vm312, %v323, %v324
      %v326 = vrot.slane %v266, 1
      %v327 = vsel %vm312, %v324, %v326
      %v328 = vrot.slane %v267, 1
      %v329 = vrot.slane %v268, 1
      %v330 = vsel %vm312, %v328, %v329
      %v331 = vrot.slane %v269, 1
      %v332 = vsel %vm312, %v329, %v331
      %v333 = vrot.slane %v270, 1
      %v334 = vrot.slane %v271, 1
      %v335 = vsel %vm312, %v333, %v334
      %v336 = vrot.slane %v272, 1
      %v337 = vsel %vm312, %v334, %v336
      %v338 = vrot.slane %v273, 1
      %v339 = vrot.slane %v274, 1
      %v340 = vsel %vm312, %v338, %v339
      %v341 = vrot.slane %v275, 1
      %v342 = vsel %vm312, %v339, %v341
      %v343 = vrot.slane %v276, 1
      %v344 = vrot.slane %v277, 1
      %v345 = vsel %vm312, %v343, %v344
      %v346 = vrot.slane %v278, 1
      %v347 = vsel %vm312, %v344, %v346
      %v348 = vrot.slane %v279, 1
      %v349 = vrot.slane %v280, 1
      %v350 = vsel %vm312, %v348, %v349
      %v351 = vrot.slane %v281, 1
      %v352 = vsel %vm312, %v349, %v351
      %353 = vrot.lane.b32.xlu0 %v315, 4
      %v354 = vpop.permute.xlu0 %353
      %355 = vrot.lane.b32.xlu0 %v317, 4
      %v356 = vpop.permute.xlu0 %355
      %357 = vrot.lane.b32.xlu0 %v320, 4
      %v358 = vpop.permute.xlu0 %357
      %359 = vrot.lane.b32.xlu0 %v322, 4
      %v360 = vpop.permute.xlu0 %359
      %361 = vrot.lane.b32.xlu0 %v325, 4
      %v362 = vpop.permute.xlu0 %361
      %363 = vrot.lane.b32.xlu0 %v327, 4
      %v364 = vpop.permute.xlu0 %363
      %365 = vrot.lane.b32.xlu0 %v330, 4
      %v366 = vpop.permute.xlu0 %365
      %367 = vrot.lane.b32.xlu0 %v332, 4
      %v368 = vpop.permute.xlu0 %367
      %369 = vrot.lane.b32.xlu0 %v335, 4
      %v370 = vpop.permute.xlu0 %369
      %371 = vrot.lane.b32.xlu0 %v337, 4
      %v372 = vpop.permute.xlu0 %371
      %373 = vrot.lane.b32.xlu0 %v340, 4
      %v374 = vpop.permute.xlu0 %373
      %375 = vrot.lane.b32.xlu0 %v342, 4
      %v376 = vpop.permute.xlu0 %375
      %377 = vrot.lane.b32.xlu0 %v345, 4
      %v378 = vpop.permute.xlu0 %377
      %379 = vrot.lane.b32.xlu0 %v347, 4
      %v380 = vpop.permute.xlu0 %379
      %381 = vrot.lane.b32.xlu0 %v350, 4
      %v382 = vpop.permute.xlu0 %381
      %383 = vrot.lane.b32.xlu0 %v352, 4
      %v384 = vpop.permute.xlu0 %383
      %vm401 = vcmask 1045504
      %v402 = vrot.slane %v258, 2
      %v403 = vrot.slane %v259, 2
      %v404 = vsel %vm401, %v402, %v403
      %v405 = vrot.slane %v260, 2
      %v406 = vsel %vm401, %v403, %v405
      %v407 = vrot.slane %v261, 2
      %v408 = vrot.slane %v262, 2
      %v409 = vsel %vm401, %v407, %v408
      %v410 = vrot.slane %v263, 2
      %v411 = vsel %vm401, %v408, %v410
      %v412 = vrot.slane %v264, 2
      %v413 = vrot.slane %v265, 2
      %v414 = vsel %vm401, %v412, %v413
      %v415 = vrot.slane %v266, 2
      %v416 = vsel %vm401, %v413, %v415
      %v417 = vrot.slane %v267, 2
      %v418 = vrot.slane %v268, 2
      %v419 = vsel %vm401, %v417, %v418
      %v420 = vrot.slane %v269, 2
      %v421 = vsel %vm401, %v418, %v420
      %v422 = vrot.slane %v270, 2
      %v423 = vrot.slane %v271, 2
      %v424 = vsel %vm401, %v422, %v423
      %v425 = vrot.slane %v272, 2
      %v426 = vsel %vm401, %v423, %v425
      %v427 = vrot.slane %v273, 2
      %v428 = vrot.slane %v274, 2
      %v429 = vsel %vm401, %v427, %v428
      %v430 = vrot.slane %v275, 2
      %v431 = vsel %vm401, %v428, %v430
      %v432 = vrot.slane %v276, 2
      %v433 = vrot.slane %v277, 2
      %v434 = vsel %vm401, %v432, %v433
      %v435 = vrot.slane %v278, 2
      %v436 = vsel %vm401, %v433, %v435
      %v437 = vrot.slane %v279, 2
      %v438 = vrot.slane %v280, 2
      %v439 = vsel %vm401, %v437, %v438
      %v440 = vrot.slane %v281, 2
      %v441 = vsel %vm401, %v438, %v440
      %442 = vrot.lane.b32.xlu0 %v404, 8
      %v443 = vpop.permute.xlu0 %442
      %444 = vrot.lane.b32.xlu0 %v406, 8
      %v445 = vpop.permute.xlu0 %444
      %446 = vrot.lane.b32.xlu0 %v409, 8
      %v447 = vpop.permute.xlu0 %446
      %448 = vrot.lane.b32.xlu0 %v411, 8
      %v449 = vpop.permute.xlu0 %448
      %450 = vrot.lane.b32.xlu0 %v414, 8
      %v451 = vpop.permute.xlu0 %450
      %452 = vrot.lane.b32.xlu0 %v416, 8
      %v453 = vpop.permute.xlu0 %452
      %454 = vrot.lane.b32.xlu0 %v419, 8
      %v455 = vpop.permute.xlu0 %454
      %456 = vrot.lane.b32.xlu0 %v421, 8
      %v457 = vpop.permute.xlu0 %456
      %458 = vrot.lane.b32.xlu0 %v424, 8
      %v459 = vpop.permute.xlu0 %458
      %460 = vrot.lane.b32.xlu0 %v426, 8
      %v461 = vpop.permute.xlu0 %460
      %462 = vrot.lane.b32.xlu0 %v429, 8
      %v463 = vpop.permute.xlu0 %462
      %464 = vrot.lane.b32.xlu0 %v431, 8
      %v465 = vpop.permute.xlu0 %464
      %466 = vrot.lane.b32.xlu0 %v434, 8
      %v467 = vpop.permute.xlu0 %466
      %468 = vrot.lane.b32.xlu0 %v436, 8
      %v469 = vpop.permute.xlu0 %468
      %470 = vrot.lane.b32.xlu0 %v439, 8
      %v471 = vpop.permute.xlu0 %470
      %472 = vrot.lane.b32.xlu0 %v441, 8
      %v473 = vpop.permute.xlu0 %472
      %492 = vrot.lane.b32.xlu0 %v261, 12
      %v493 = vpop.permute.xlu0 %492
      %494 = vrot.lane.b32.xlu0 %v262, 12
      %v495 = vpop.permute.xlu0 %494
      %496 = vrot.lane.b32.xlu0 %v264, 12
      %v497 = vpop.permute.xlu0 %496
      %498 = vrot.lane.b32.xlu0 %v265, 12
      %v499 = vpop.permute.xlu0 %498
      %500 = vrot.lane.b32.xlu0 %v267, 12
      %v501 = vpop.permute.xlu0 %500
      %502 = vrot.lane.b32.xlu0 %v268, 12
      %v503 = vpop.permute.xlu0 %502
      %504 = vrot.lane.b32.xlu0 %v270, 12
      %v505 = vpop.permute.xlu0 %504
      %506 = vrot.lane.b32.xlu0 %v271, 12
      %v507 = vpop.permute.xlu0 %506
      %508 = vrot.lane.b32.xlu0 %v273, 12
      %v509 = vpop.permute.xlu0 %508
      %510 = vrot.lane.b32.xlu0 %v274, 12
      %v511 = vpop.permute.xlu0 %510
      %512 = vrot.lane.b32.xlu0 %v276, 12
      %v513 = vpop.permute.xlu0 %512
      %514 = vrot.lane.b32.xlu0 %v277, 12
      %v515 = vpop.permute.xlu0 %514
      %516 = vrot.lane.b32.xlu0 %v279, 12
      %v517 = vpop.permute.xlu0 %516
      %518 = vrot.lane.b32.xlu0 %v280, 12
      %v519 = vpop.permute.xlu0 %518
      %520 = vrot.lane.b32.xlu0 %v282, 12
      %v521 = vpop.permute.xlu0 %520
      %522 = vrot.lane.b32.xlu0 %v283, 12
      %v523 = vpop.permute.xlu0 %522
      %v541 = vrot.slane %v282, 1
      %v542 = vrot.slane %v283, 1
      %v543 = vsel %vm312, %v541, %v542
      %v544 = vrot.slane %v284, 1
      %v545 = vsel %vm312, %v542, %v544
      %546 = vrot.lane.b32.xlu0 %v320, 16
      %v547 = vpop.permute.xlu0 %546
      %548 = vrot.lane.b32.xlu0 %v322, 16
      %v549 = vpop.permute.xlu0 %548
      %550 = vrot.lane.b32.xlu0 %v325, 16
      %v551 = vpop.permute.xlu0 %550
      %552 = vrot.lane.b32.xlu0 %v327, 16
      %v553 = vpop.permute.xlu0 %552
      %554 = vrot.lane.b32.xlu0 %v330, 16
      %v555 = vpop.permute.xlu0 %554
      %556 = vrot.lane.b32.xlu0 %v332, 16
      %v557 = vpop.permute.xlu0 %556
      %558 = vrot.lane.b32.xlu0 %v335, 16
      %v559 = vpop.permute.xlu0 %558
      %560 = vrot.lane.b32.xlu0 %v337, 16
      %v561 = vpop.permute.xlu0 %560
      %562 = vrot.lane.b32.xlu0 %v340, 16
      %v563 = vpop.permute.xlu0 %562
      %564 = vrot.lane.b32.xlu0 %v342, 16
      %v565 = vpop.permute.xlu0 %564
      %566 = vrot.lane.b32.xlu0 %v345, 16
      %v567 = vpop.permute.xlu0 %566
      %568 = vrot.lane.b32.xlu0 %v347, 16
      %v569 = vpop.permute.xlu0 %568
      %570 = vrot.lane.b32.xlu0 %v350, 16
      %v571 = vpop.permute.xlu0 %570
      %572 = vrot.lane.b32.xlu0 %v352, 16
      %v573 = vpop.permute.xlu0 %572
      %574 = vrot.lane.b32.xlu0 %v543, 16
      %v575 = vpop.permute.xlu0 %574
      %576 = vrot.lane.b32.xlu0 %v545, 16
      %v577 = vpop.permute.xlu0 %576
      %v594 = vrot.slane %v282, 2
      %v595 = vrot.slane %v283, 2
      %v596 = vsel %vm401, %v594, %v595
      %v597 = vrot.slane %v284, 2
      %v598 = vsel %vm401, %v595, %v597
      %599 = vrot.lane.b32.xlu0 %v409, 20
      %v600 = vpop.permute.xlu0 %599
      %601 = vrot.lane.b32.xlu0 %v411, 20
      %v602 = vpop.permute.xlu0 %601
      %603 = vrot.lane.b32.xlu0 %v414, 20
      %v604 = vpop.permute.xlu0 %603
      %605 = vrot.lane.b32.xlu0 %v416, 20
      %v606 = vpop.permute.xlu0 %605
      %607 = vrot.lane.b32.xlu0 %v419, 20
      %v608 = vpop.permute.xlu0 %607
      %609 = vrot.lane.b32.xlu0 %v421, 20
      %v610 = vpop.permute.xlu0 %609
      %611 = vrot.lane.b32.xlu0 %v424, 20
      %v612 = vpop.permute.xlu0 %611
      %613 = vrot.lane.b32.xlu0 %v426, 20
      %v614 = vpop.permute.xlu0 %613
      %615 = vrot.lane.b32.xlu0 %v429, 20
      %v616 = vpop.permute.xlu0 %615
      %617 = vrot.lane.b32.xlu0 %v431, 20
      %v618 = vpop.permute.xlu0 %617
      %619 = vrot.lane.b32.xlu0 %v434, 20
      %v620 = vpop.permute.xlu0 %619
      %621 = vrot.lane.b32.xlu0 %v436, 20
      %v622 = vpop.permute.xlu0 %621
      %623 = vrot.lane.b32.xlu0 %v439, 20
      %v624 = vpop.permute.xlu0 %623
      %625 = vrot.lane.b32.xlu0 %v441, 20
      %v626 = vpop.permute.xlu0 %625
      %627 = vrot.lane.b32.xlu0 %v596, 20
      %v628 = vpop.permute.xlu0 %627
      %629 = vrot.lane.b32.xlu0 %v598, 20
      %v630 = vpop.permute.xlu0 %629
      %649 = vrot.lane.b32.xlu0 %v264, 24
      %v650 = vpop.permute.xlu0 %649
      %651 = vrot.lane.b32.xlu0 %v265, 24
      %v652 = vpop.permute.xlu0 %651
      %653 = vrot.lane.b32.xlu0 %v267, 24
      %v654 = vpop.permute.xlu0 %653
      %655 = vrot.lane.b32.xlu0 %v268, 24
      %v656 = vpop.permute.xlu0 %655
      %657 = vrot.lane.b32.xlu0 %v270, 24
      %v658 = vpop.permute.xlu0 %657
      %659 = vrot.lane.b32.xlu0 %v271, 24
      %v660 = vpop.permute.xlu0 %659
      %661 = vrot.lane.b32.xlu0 %v273, 24
      %v662 = vpop.permute.xlu0 %661
      %663 = vrot.lane.b32.xlu0 %v274, 24
      %v664 = vpop.permute.xlu0 %663
      %665 = vrot.lane.b32.xlu0 %v276, 24
      %v666 = vpop.permute.xlu0 %665
      %667 = vrot.lane.b32.xlu0 %v277, 24
      %v668 = vpop.permute.xlu0 %667
      %669 = vrot.lane.b32.xlu0 %v279, 24
      %v670 = vpop.permute.xlu0 %669
      %671 = vrot.lane.b32.xlu0 %v280, 24
      %v672 = vpop.permute.xlu0 %671
      %673 = vrot.lane.b32.xlu0 %v282, 24
      %v674 = vpop.permute.xlu0 %673
      %675 = vrot.lane.b32.xlu0 %v283, 24
      %v676 = vpop.permute.xlu0 %675
      %677 = vrot.lane.b32.xlu0 %v285, 24
      %v678 = vpop.permute.xlu0 %677
      %679 = vrot.lane.b32.xlu0 %v286, 24
      %v680 = vpop.permute.xlu0 %679
      %v698 = vrot.slane %v285, 1
      %v699 = vrot.slane %v286, 1
      %v700 = vsel %vm312, %v698, %v699
      %v701 = vrot.slane %v287, 1
      %v702 = vsel %vm312, %v699, %v701
      %703 = vrot.lane.b32.xlu0 %v325, 28
      %v704 = vpop.permute.xlu0 %703
      %705 = vrot.lane.b32.xlu0 %v327, 28
      %v706 = vpop.permute.xlu0 %705
      %707 = vrot.lane.b32.xlu0 %v330, 28
      %v708 = vpop.permute.xlu0 %707
      %709 = vrot.lane.b32.xlu0 %v332, 28
      %v710 = vpop.permute.xlu0 %709
      %711 = vrot.lane.b32.xlu0 %v335, 28
      %v712 = vpop.permute.xlu0 %711
      %713 = vrot.lane.b32.xlu0 %v337, 28
      %v714 = vpop.permute.xlu0 %713
      %715 = vrot.lane.b32.xlu0 %v340, 28
      %v716 = vpop.permute.xlu0 %715
      %717 = vrot.lane.b32.xlu0 %v342, 28
      %v718 = vpop.permute.xlu0 %717
      %719 = vrot.lane.b32.xlu0 %v345, 28
      %v720 = vpop.permute.xlu0 %719
      %721 = vrot.lane.b32.xlu0 %v347, 28
      %v722 = vpop.permute.xlu0 %721
      %723 = vrot.lane.b32.xlu0 %v350, 28
      %v724 = vpop.permute.xlu0 %723
      %725 = vrot.lane.b32.xlu0 %v352, 28
      %v726 = vpop.permute.xlu0 %725
      %727 = vrot.lane.b32.xlu0 %v543, 28
      %v728 = vpop.permute.xlu0 %727
      %729 = vrot.lane.b32.xlu0 %v545, 28
      %v730 = vpop.permute.xlu0 %729
      %731 = vrot.lane.b32.xlu0 %v700, 28
      %v732 = vpop.permute.xlu0 %731
      %733 = vrot.lane.b32.xlu0 %v702, 28
      %v734 = vpop.permute.xlu0 %733
      %v751 = vrot.slane %v285, 2
      %v752 = vrot.slane %v286, 2
      %v753 = vsel %vm401, %v751, %v752
      %v754 = vrot.slane %v287, 2
      %v755 = vsel %vm401, %v752, %v754
      %756 = vrot.lane.b32.xlu0 %v414, 32
      %v757 = vpop.permute.xlu0 %756
      %758 = vrot.lane.b32.xlu0 %v416, 32
      %v759 = vpop.permute.xlu0 %758
      %760 = vrot.lane.b32.xlu0 %v419, 32
      %v761 = vpop.permute.xlu0 %760
      %762 = vrot.lane.b32.xlu0 %v421, 32
      %v763 = vpop.permute.xlu0 %762
      %764 = vrot.lane.b32.xlu0 %v424, 32
      %v765 = vpop.permute.xlu0 %764
      %766 = vrot.lane.b32.xlu0 %v426, 32
      %v767 = vpop.permute.xlu0 %766
      %768 = vrot.lane.b32.xlu0 %v429, 32
      %v769 = vpop.permute.xlu0 %768
      %770 = vrot.lane.b32.xlu0 %v431, 32
      %v771 = vpop.permute.xlu0 %770
      %772 = vrot.lane.b32.xlu0 %v434, 32
      %v773 = vpop.permute.xlu0 %772
      %774 = vrot.lane.b32.xlu0 %v436, 32
      %v775 = vpop.permute.xlu0 %774
      %776 = vrot.lane.b32.xlu0 %v439, 32
      %v777 = vpop.permute.xlu0 %776
      %778 = vrot.lane.b32.xlu0 %v441, 32
      %v779 = vpop.permute.xlu0 %778
      %780 = vrot.lane.b32.xlu0 %v596, 32
      %v781 = vpop.permute.xlu0 %780
      %782 = vrot.lane.b32.xlu0 %v598, 32
      %v783 = vpop.permute.xlu0 %782
      %784 = vrot.lane.b32.xlu0 %v753, 32
      %v785 = vpop.permute.xlu0 %784
      %786 = vrot.lane.b32.xlu0 %v755, 32
      %v787 = vpop.permute.xlu0 %786
      %vm804 = vcmask 31744
      %v805 = vsel %vm804, %v258, %v354
      %v806 = vsel %vm804, %v259, %v356
      %v807 = vsel %vm804, %v261, %v358
      %v808 = vsel %vm804, %v262, %v360
      %v809 = vsel %vm804, %v264, %v362
      %v810 = vsel %vm804, %v265, %v364
      %v811 = vsel %vm804, %v267, %v366
      %v812 = vsel %vm804, %v268, %v368
      %v813 = vsel %vm804, %v270, %v370
      %v814 = vsel %vm804, %v271, %v372
      %v815 = vsel %vm804, %v273, %v374
      %v816 = vsel %vm804, %v274, %v376
      %v817 = vsel %vm804, %v276, %v378
      %v818 = vsel %vm804, %v277, %v380
      %v819 = vsel %vm804, %v279, %v382
      %v820 = vsel %vm804, %v280, %v384
      %vm821 = vcmask 64512
      %v822 = vsel %vm821, %v805, %v443
      %v823 = vsel %vm821, %v806, %v445
      %v824 = vsel %vm821, %v807, %v447
      %v825 = vsel %vm821, %v808, %v449
      %v826 = vsel %vm821, %v809, %v451
      %v827 = vsel %vm821, %v810, %v453
      %v828 = vsel %vm821, %v811, %v455
      %v829 = vsel %vm821, %v812, %v457
      %v830 = vsel %vm821, %v813, %v459
      %v831 = vsel %vm821, %v814, %v461
      %v832 = vsel %vm821, %v815, %v463
      %v833 = vsel %vm821, %v816, %v465
      %v834 = vsel %vm821, %v817, %v467
      %v835 = vsel %vm821, %v818, %v469
      %v836 = vsel %vm821, %v819, %v471
      %v837 = vsel %vm821, %v820, %v473
      %vm838 = vcmask 97280
      %v839 = vsel %vm838, %v822, %v493
      %v840 = vsel %vm838, %v823, %v495
      %v841 = vsel %vm838, %v824, %v497
      %v842 = vsel %vm838, %v825, %v499
      %v843 = vsel %vm838, %v826, %v501
      %v844 = vsel %vm838, %v827, %v503
      %v845 = vsel %vm838, %v828, %v505
      %v846 = vsel %vm838, %v829, %v507
      %v847 = vsel %vm838, %v830, %v509
      %v848 = vsel %vm838, %v831, %v511
      %v849 = vsel %vm838, %v832, %v513
      %v850 = vsel %vm838, %v833, %v515
      %v851 = vsel %vm838, %v834, %v517
      %v852 = vsel %vm838, %v835, %v519
      %v853 = vsel %vm838, %v836, %v521
      %v854 = vsel %vm838, %v837, %v523
      %vm855 = vcmask 130048
      %v856 = vsel %vm855, %v839, %v547
      %v857 = vsel %vm855, %v840, %v549
      %v858 = vsel %vm855, %v841, %v551
      %v859 = vsel %vm855, %v842, %v553
      %v860 = vsel %vm855, %v843, %v555
      %v861 = vsel %vm855, %v844, %v557
      %v862 = vsel %vm855, %v845, %v559
      %v863 = vsel %vm855, %v846, %v561
      %v864 = vsel %vm855, %v847, %v563
      %v865 = vsel %vm855, %v848, %v565
      %v866 = vsel %vm855, %v849, %v567
      %v867 = vsel %vm855, %v850, %v569
      %v868 = vsel %vm855, %v851, %v571
      %v869 = vsel %vm855, %v852, %v573
      %v870 = vsel %vm855, %v853, %v575
      %v871 = vsel %vm855, %v854, %v577
      %vm872 = vcmask 162816
      %v873 = vsel %vm872, %v856, %v600
      %v874 = vsel %vm872, %v857, %v602
      %v875 = vsel %vm872, %v858, %v604
      %v876 = vsel %vm872, %v859, %v606
      %v877 = vsel %vm872, %v860, %v608
      %v878 = vsel %vm872, %v861, %v610
      %v879 = vsel %vm872, %v862, %v612
      %v880 = vsel %vm872, %v863, %v614
      %v881 = vsel %vm872, %v864, %v616
      %v882 = vsel %vm872, %v865, %v618
      %v883 = vsel %vm872, %v866, %v620
      %v884 = vsel %vm872, %v867, %v622
      %v885 = vsel %vm872, %v868, %v624
      %v886 = vsel %vm872, %v869, %v626
      %v887 = vsel %vm872, %v870, %v628
      %v888 = vsel %vm872, %v871, %v630
      %vm889 = vcmask 195584
      %v890 = vsel %vm889, %v873, %v650
      %v891 = vsel %vm889, %v874, %v652
      %v892 = vsel %vm889, %v875, %v654
      %v893 = vsel %vm889, %v876, %v656
      %v894 = vsel %vm889, %v877, %v658
      %v895 = vsel %vm889, %v878, %v660
      %v896 = vsel %vm889, %v879, %v662
      %v897 = vsel %vm889, %v880, %v664
      %v898 = vsel %vm889, %v881, %v666
      %v899 = vsel %vm889, %v882, %v668
      %v900 = vsel %vm889, %v883, %v670
      %v901 = vsel %vm889, %v884, %v672
      %v902 = vsel %vm889, %v885, %v674
      %v903 = vsel %vm889, %v886, %v676
      %v904 = vsel %vm889, %v887, %v678
      %v905 = vsel %vm889, %v888, %v680
      %vm906 = vcmask 228352
      %v907 = vsel %vm906, %v890, %v704
      %v908 = vsel %vm906, %v891, %v706
      %v909 = vsel %vm906, %v892, %v708
      %v910 = vsel %vm906, %v893, %v710
      %v911 = vsel %vm906, %v894, %v712
      %v912 = vsel %vm906, %v895, %v714
      %v913 = vsel %vm906, %v896, %v716
      %v914 = vsel %vm906, %v897, %v718
      %v915 = vsel %vm906, %v898, %v720
      %v916 = vsel %vm906, %v899, %v722
      %v917 = vsel %vm906, %v900, %v724
      %v918 = vsel %vm906, %v901, %v726
      %v919 = vsel %vm906, %v902, %v728
      %v920 = vsel %vm906, %v903, %v730
      %v921 = vsel %vm906, %v904, %v732
      %v922 = vsel %vm906, %v905, %v734
      %vm923 = vcmask 261120
      %v924 = vsel %vm923, %v907, %v757
      %v925 = vsel %vm923, %v908, %v759
      %v926 = vsel %vm923, %v909, %v761
      %v927 = vsel %vm923, %v910, %v763
      %v928 = vsel %vm923, %v911, %v765
      %v929 = vsel %vm923, %v912, %v767
      %v930 = vsel %vm923, %v913, %v769
      %v931 = vsel %vm923, %v914, %v771
      %v932 = vsel %vm923, %v915, %v773
      %v933 = vsel %vm923, %v916, %v775
      %v934 = vsel %vm923, %v917, %v777
      %v935 = vsel %vm923, %v918, %v779
      %v936 = vsel %vm923, %v919, %v781
      %v937 = vsel %vm923, %v920, %v783
      %v938 = vsel %vm923, %v921, %v785
      %v939 = vsel %vm923, %v922, %v787
      %v940 = vpack.c.bf16 %v925, %v924
      %v941 = vpack.c.bf16 %v927, %v926
      %v942 = vpack.c.bf16 %v929, %v928
      %v943 = vpack.c.bf16 %v931, %v930
      %v944 = vpack.c.bf16 %v933, %v932
      %v945 = vpack.c.bf16 %v935, %v934
      %v946 = vpack.c.bf16 %v937, %v936
      %v947 = vpack.c.bf16 %v939, %v938
      %v948 = vld [vmem:[%s217] sm:$0xf]
      %v949 = vld [vmem:[%s217 + $0x4] sm:$0xf]
      %v950 = vld [vmem:[%s217 + $0x8] sm:$0xf]
      %v951 = vld [vmem:[%s217 + $0xc] sm:$0xf]
      %v952 = vld [vmem:[%s217 + $0x10] sm:$0x3]
      %v953 = vld [vmem:[%s2] sm:$0x1]
      %v955 = vlaneseq
      %v956 = vshrl.u32 %v955, 7
      %v957 = vsub.s32 0, %v956
      %v958 = vrot.slane %v953, %v957
      %v965 = vunpack.c.l.b16 %v948
      %v966 = vunpack.c.l.b16 %v949
      %v967 = vunpack.c.l.b16 %v950
      %v968 = vunpack.c.l.b16 %v951
      %v969 = vunpack.c.l.b16 %v952
      %v970 = vpack.c.b16 %v966, %v965
      %v971 = vpack.c.b16 %v968, %v967
      %v972 = vpack.c.b16 %v969, %v969
      %vm975 = vcmask 293888
      %v977 = vsel %vm975, %v940, 0
      %v980 = vsel %vm975, %v941, 0
      %v983 = vsel %vm975, %v942, 0
      %v986 = vsel %vm975, %v943, 0
      %v989 = vsel %vm975, %v944, 0
      %v992 = vsel %vm975, %v945, 0
      %v995 = vsel %vm975, %v946, 0
      %v998 = vsel %vm975, %v947, 0
      %vm1000 = vcmask 1041408
      %v1002 = vsel %vm1000, %v972, 0
      %1004 = vmatprep.subr.bf16.mxu0 0
      %1005 = vmatpush1.bf16.msra.mxu0 %v970
      %1006 = vmatprep.subr.bf16.mxu0 0
      %1007 = vmatpush1.bf16.msra.mxu0 %v971
      %1008 = vmatprep.subr.bf16.mxu0 0
      %1009 = vmatpush1.bf16.msra.mxu0 %v1002
      %1010 = vmatprep.subr.bf16.mxu0 0
      %1011 = vmatpush1.bf16.msra.mxu0 0
      %1012 = vmatprep.subr.bf16.mxu0 0
      %1013 = vmatpush1.bf16.msra.mxu0 0
      %1014 = vmatprep.subr.bf16.mxu0 0
      %1015 = vmatpush1.bf16.msra.mxu0 0
      %1016 = vmatprep.subr.bf16.mxu0 0
      %1017 = vmatpush1.bf16.msra.mxu0 0
      %1018 = vmatprep.subr.bf16.mxu0 0
      %1019 = vmatpush1.bf16.msra.mxu0 0
      %1020 = vmatprep.subr.bf16.mxu0 0
      %1021 = vmatpush1.bf16.msra.mxu0 0
      %1022 = vmatprep.subr.bf16.mxu0 0
      %1023 = vmatpush1.bf16.msra.mxu0 0
      %1024 = vmatprep.subr.bf16.mxu0 0
      %1025 = vmatpush1.bf16.msra.mxu0 0
      %1026 = vmatprep.subr.bf16.mxu0 0
      %1027 = vmatpush1.bf16.msra.mxu0 0
      %1028 = vmatprep.subr.bf16.mxu0 0
      %1029 = vmatpush1.bf16.msra.mxu0 0
      %1030 = vmatprep.subr.bf16.mxu0 0
      %1031 = vmatpush1.bf16.msra.mxu0 0
      %1032 = vmatprep.subr.bf16.mxu0 0
      %1033 = vmatpush1.bf16.msra.mxu0 0
      %1034 = vmatprep.subr.bf16.mxu0 0
      %1035 = vmatpush1.bf16.msra.mxu0 0
      %1036 = vmatprep.mubr.bf16.mxu0 0
      %1037 = vmatmul.mubr.bf16.gmra.mrb[0].mxu0 %v977
      %v1038 = vpop.f32.mrb[0].mxu0
      %v1039 = vadd.f32 %v958, %v1038
      %v1040 = vpop.f32.mrb[0].mxu0
      %v1041 = vpop.f32.mrb[0].mxu0
      %v1042 = vadd.f32 %v958, %v1041
      %v1043 = vpop.f32.mrb[0].mxu0
      %1044 = vmatprep.mubr.bf16.mxu0 0
      %1045 = vmatmul.mubr.bf16.gmra.mrb[0].mxu0 %v980
      %v1046 = vpop.f32.mrb[0].mxu0
      %v1047 = vadd.f32 %v958, %v1046
      %v1048 = vpop.f32.mrb[0].mxu0
      %v1049 = vpop.f32.mrb[0].mxu0
      %v1050 = vadd.f32 %v958, %v1049
      %v1051 = vpop.f32.mrb[0].mxu0
      %1052 = vmatprep.mubr.bf16.mxu0 0
      %1053 = vmatmul.mubr.bf16.gmra.mrb[0].mxu0 %v983
      %v1054 = vpop.f32.mrb[0].mxu0
      %v1055 = vadd.f32 %v958, %v1054
      %v1056 = vpop.f32.mrb[0].mxu0
      %v1057 = vpop.f32.mrb[0].mxu0
      %v1058 = vadd.f32 %v958, %v1057
      %v1059 = vpop.f32.mrb[0].mxu0
      %1060 = vmatprep.mubr.bf16.mxu0 0
      %1061 = vmatmul.mubr.bf16.gmra.mrb[0].mxu0 %v986
      %v1062 = vpop.f32.mrb[0].mxu0
      %v1063 = vadd.f32 %v958, %v1062
      %v1064 = vpop.f32.mrb[0].mxu0
      %v1065 = vpop.f32.mrb[0].mxu0
      %v1066 = vadd.f32 %v958, %v1065
      %v1067 = vpop.f32.mrb[0].mxu0
      %1068 = vmatprep.mubr.bf16.mxu0 0
      %1069 = vmatmul.mubr.bf16.gmra.mrb[0].mxu0 %v989
      %v1070 = vpop.f32.mrb[0].mxu0
      %v1071 = vadd.f32 %v958, %v1070
      %v1072 = vpop.f32.mrb[0].mxu0
      %v1073 = vpop.f32.mrb[0].mxu0
      %v1074 = vadd.f32 %v958, %v1073
      %v1075 = vpop.f32.mrb[0].mxu0
      %1076 = vmatprep.mubr.bf16.mxu0 0
      %1077 = vmatmul.mubr.bf16.gmra.mrb[0].mxu0 %v992
      %v1078 = vpop.f32.mrb[0].mxu0
      %v1079 = vadd.f32 %v958, %v1078
      %v1080 = vpop.f32.mrb[0].mxu0
      %v1081 = vpop.f32.mrb[0].mxu0
      %v1082 = vadd.f32 %v958, %v1081
      %v1083 = vpop.f32.mrb[0].mxu0
      %1084 = vmatprep.mubr.bf16.mxu0 0
      %1085 = vmatmul.mubr.bf16.gmra.mrb[0].mxu0 %v995
      %v1086 = vpop.f32.mrb[0].mxu0
      %v1087 = vadd.f32 %v958, %v1086
      %v1088 = vpop.f32.mrb[0].mxu0
      %v1089 = vpop.f32.mrb[0].mxu0
      %v1090 = vadd.f32 %v958, %v1089
      %v1091 = vpop.f32.mrb[0].mxu0
      %1092 = vmatprep.mubr.bf16.mxu0 0
      %1093 = vmatmul.mubr.bf16.gmra.mrb[0].mxu0 %v998
      %v1094 = vpop.f32.mrb[0].mxu0
      %v1095 = vadd.f32 %v958, %v1094
      %v1096 = vpop.f32.mrb[0].mxu0
      %v1097 = vpop.f32.mrb[0].mxu0
      %v1098 = vadd.f32 %v958, %v1097
      %v1099 = vpop.f32.mrb[0].mxu0
      %1100 = vdwg.mxu0
      %vm1101 = vcmp.ge.f32.partialorder %v1039, 0.0
      %vm1102 = vcmp.ge.f32.partialorder %v1042, 0.0
      %vm1103 = vcmp.ge.f32.partialorder %v1047, 0.0
      %vm1104 = vcmp.ge.f32.partialorder %v1050, 0.0
      %vm1105 = vcmp.ge.f32.partialorder %v1055, 0.0
      %vm1106 = vcmp.ge.f32.partialorder %v1058, 0.0
      %vm1107 = vcmp.ge.f32.partialorder %v1063, 0.0
      %vm1108 = vcmp.ge.f32.partialorder %v1066, 0.0
      %vm1109 = vcmp.ge.f32.partialorder %v1071, 0.0
      %vm1110 = vcmp.ge.f32.partialorder %v1074, 0.0
      %vm1111 = vcmp.ge.f32.partialorder %v1079, 0.0
      %vm1112 = vcmp.ge.f32.partialorder %v1082, 0.0
      %vm1113 = vcmp.ge.f32.partialorder %v1087, 0.0
      %vm1114 = vcmp.ge.f32.partialorder %v1090, 0.0
      %vm1115 = vcmp.ge.f32.partialorder %v1095, 0.0
      %vm1116 = vcmp.ge.f32.partialorder %v1098, 0.0
      %v1117 = vmul.f32 %v1039, 0.2
      %v1118 = vmul.f32 %v1042, 0.2
      %v1119 = vmul.f32 %v1047, 0.2
      %v1120 = vmul.f32 %v1050, 0.2
      %v1121 = vmul.f32 %v1055, 0.2
      %v1122 = vmul.f32 %v1058, 0.2
      %v1123 = vmul.f32 %v1063, 0.2
      %v1124 = vmul.f32 %v1066, 0.2
      %v1125 = vmul.f32 %v1071, 0.2
      %v1126 = vmul.f32 %v1074, 0.2
      %v1127 = vmul.f32 %v1079, 0.2
      %v1128 = vmul.f32 %v1082, 0.2
      %v1129 = vmul.f32 %v1087, 0.2
      %v1130 = vmul.f32 %v1090, 0.2
      %v1131 = vmul.f32 %v1095, 0.2
      %v1132 = vmul.f32 %v1098, 0.2
      %v1133 = vsel %vm1101, %v1039, %v1117
      %v1134 = vsel %vm1102, %v1042, %v1118
      %v1135 = vsel %vm1103, %v1047, %v1119
      %v1136 = vsel %vm1104, %v1050, %v1120
      %v1137 = vsel %vm1105, %v1055, %v1121
      %v1138 = vsel %vm1106, %v1058, %v1122
      %v1139 = vsel %vm1107, %v1063, %v1123
      %v1140 = vsel %vm1108, %v1066, %v1124
      %v1141 = vsel %vm1109, %v1071, %v1125
      %v1142 = vsel %vm1110, %v1074, %v1126
      %v1143 = vsel %vm1111, %v1079, %v1127
      %v1144 = vsel %vm1112, %v1082, %v1128
      %v1145 = vsel %vm1113, %v1087, %v1129
      %v1146 = vsel %vm1114, %v1090, %v1130
      %v1147 = vsel %vm1115, %v1095, %v1131
      %v1148 = vsel %vm1116, %v1098, %v1132
      %v1149 = vmul.f32 %v1133, 1.4142135
      %v1150 = vmul.f32 %v1134, 1.4142135
      %v1151 = vmul.f32 %v1135, 1.4142135
      %v1152 = vmul.f32 %v1136, 1.4142135
      %v1153 = vmul.f32 %v1137, 1.4142135
      %v1154 = vmul.f32 %v1138, 1.4142135
      %v1155 = vmul.f32 %v1139, 1.4142135
      %v1156 = vmul.f32 %v1140, 1.4142135
      %v1157 = vmul.f32 %v1141, 1.4142135
      %v1158 = vmul.f32 %v1142, 1.4142135
      %v1159 = vmul.f32 %v1143, 1.4142135
      %v1160 = vmul.f32 %v1144, 1.4142135
      %v1161 = vmul.f32 %v1145, 1.4142135
      %v1162 = vmul.f32 %v1146, 1.4142135
      %v1163 = vmul.f32 %v1147, 1.4142135
      %v1164 = vmul.f32 %v1148, 1.4142135
      %v1165 = vpack.c.bf16 %v1150, %v1149
      %v1166 = vpack.c.bf16 %v1152, %v1151
      %v1167 = vpack.c.bf16 %v1154, %v1153
      %v1168 = vpack.c.bf16 %v1156, %v1155
      %v1169 = vpack.c.bf16 %v1158, %v1157
      %v1170 = vpack.c.bf16 %v1160, %v1159
      %v1171 = vpack.c.bf16 %v1162, %v1161
      %v1172 = vpack.c.bf16 %v1164, %v1163
      %v1181 = vunpack.c.l.b16 %v1165
      %v1182 = vunpack.c.h.b16 %v1165
      %v1183 = vunpack.c.l.b16 %v1166
      %v1184 = vunpack.c.h.b16 %v1166
      %v1185 = vunpack.c.l.b16 %v1167
      %v1186 = vunpack.c.h.b16 %v1167
      %v1187 = vunpack.c.l.b16 %v1168
      %v1188 = vunpack.c.h.b16 %v1168
      %v1189 = vunpack.c.l.b16 %v1169
      %v1190 = vunpack.c.h.b16 %v1169
      %v1191 = vunpack.c.l.b16 %v1170
      %v1192 = vunpack.c.h.b16 %v1170
      %v1193 = vunpack.c.l.b16 %v1171
      %v1194 = vunpack.c.h.b16 %v1171
      %v1195 = vunpack.c.l.b16 %v1172
      %v1196 = vunpack.c.h.b16 %v1172
      %v1197 = vpack.c.b16 %v1181, %v1181
      %v1198 = vpack.c.b16 %v1182, %v1182
      %v1199 = vpack.c.b16 %v1183, %v1183
      %v1200 = vpack.c.b16 %v1184, %v1184
      %v1201 = vpack.c.b16 %v1185, %v1185
      %v1202 = vpack.c.b16 %v1186, %v1186
      %v1203 = vpack.c.b16 %v1187, %v1187
      %v1204 = vpack.c.b16 %v1188, %v1188
      %v1205 = vpack.c.b16 %v1189, %v1189
      %v1206 = vpack.c.b16 %v1190, %v1190
      %v1207 = vpack.c.b16 %v1191, %v1191
      %v1208 = vpack.c.b16 %v1192, %v1192
      %v1209 = vpack.c.b16 %v1193, %v1193
      %v1210 = vpack.c.b16 %v1194, %v1194
      %v1211 = vpack.c.b16 %v1195, %v1195
      %v1212 = vpack.c.b16 %v1196, %v1196
      %vm1229 = vcmask 60416
      %1230 = vst.msk [vmem:[%s224] sm:$0xf] %vm1229, %v1197
      %1231 = vst.msk [vmem:[%s224 + $0x4] sm:$0xf] %vm1229, %v1198
      %1232 = vst.msk [vmem:[%s224 + $0x8] sm:$0xf] %vm1229, %v1199
      %1233 = vst.msk [vmem:[%s224 + $0xc] sm:$0xf] %vm1229, %v1200
      %1234 = vst.msk [vmem:[%s224 + $0x10] sm:$0xf] %vm1229, %v1201
      %1235 = vst.msk [vmem:[%s224 + $0x14] sm:$0xf] %vm1229, %v1202
      %1236 = vst.msk [vmem:[%s224 + $0x18] sm:$0xf] %vm1229, %v1203
      %1237 = vst.msk [vmem:[%s224 + $0x1c] sm:$0xf] %vm1229, %v1204
      %1238 = vst.msk [vmem:[%s224 + $0x20] sm:$0xf] %vm1229, %v1205
      %1239 = vst.msk [vmem:[%s224 + $0x24] sm:$0xf] %vm1229, %v1206
      %1240 = vst.msk [vmem:[%s224 + $0x28] sm:$0xf] %vm1229, %v1207
      %1241 = vst.msk [vmem:[%s224 + $0x2c] sm:$0xf] %vm1229, %v1208
      %1242 = vst.msk [vmem:[%s224 + $0x30] sm:$0xf] %vm1229, %v1209
      %1243 = vst.msk [vmem:[%s224 + $0x34] sm:$0xf] %vm1229, %v1210
      %1244 = vst.msk [vmem:[%s224 + $0x38] sm:$0xf] %vm1229, %v1211
      %1245 = vst.msk [vmem:[%s224 + $0x3c] sm:$0xf] %vm1229, %v1212
      %s1246 = smul.u32 %s18, 2
      %s1247 = sadd.s32 %s1246, %s19
      %p1248 = scmp.lt.s32.totalorder %s1247, 3
      %s1249 = scalar_select %p1248, %s1247, 3
      %s1250 = smul.addr %s1249, 16
      %s1251 = smul.addr %s1250, 4
      %s1252 = scalar_lea.vmem %s3, %s1251
      // Predicated region
      $region33: #{tpu_custom_call.1} parent=31 // pred_check
        %p1253 = pneg %p125
      $region34: #{tpu_custom_call.1} parent=31 // pred_check_branch
        %1255 = sbr.rel (%p1253) target = $region36
      $region35: #{tpu_custom_call.1} parent=31 // pred_region
        %s1256 = smul.u32 %s18, 2
        %s1257 = sadd.s32 %s1256, %s19
      $region36: #{tpu_custom_call.1} parent=31 // pred_fallthru
        _
    $region32: #{tpu_custom_call.1} parent=5 // pred_fallthru
      _
    %p1258 = scmp.le.s32.totalorder 2, %s9
    // Predicated region
    $region37: #{tpu_custom_call.1} parent=5 // pred_check
      %p1259 = pneg %p1258
    $region38: #{tpu_custom_call.1} parent=5 // pred_check_branch
      %1261 = sbr.rel (%p1259) target = $region40
    $region39: #{tpu_custom_call.1} parent=5 // pred_region
      %s1262 = ssub.s32 %s9, 2
      // Predicated region
      $region41: #{tpu_custom_call.1} parent=39 // pred_check
        %p1263 = pneg %p131
      $region42: #{tpu_custom_call.1} parent=39 // pred_check_branch
        %1265 = sbr.rel (%p1263) target = $region44
      $region43: #{tpu_custom_call.1} parent=39 // pred_region
        %s1266 = smul.u32 %s20, 2
        %s1267 = sadd.s32 %s1266, %s21
        %p1268 = scmp.lt.s32.totalorder %s1267, 3
        %s1269 = scalar_select %p1268, %s1267, 3
        %s1270 = smul.addr %s1269, 16
        %s1271 = smul.addr %s1270, 4
        %s1272 = scalar_lea.vmem %s3, %s1271
      $region44: #{tpu_custom_call.1} parent=39 // pred_fallthru
        _
    $region40: #{tpu_custom_call.1} parent=5 // pred_fallthru
      _
  $region6: #{tpu_custom_call.1} parent=0 // loop_footer
    %s13 = sadd.s32 1, %s9
  $region7: #{tpu_custom_call.1} parent=0 // loop_footer_branch
    %8 = sbr.rel target = $region3
  $region8: #{tpu_custom_call.1} parent=0 // loop_exit
    _

</llo_original>
